<compile_context>
chip_gen: v7x
topology: tpu7x:2x2x1
jax: 0.10.0
libtpu: 0.0.40
codegen_flags: <defaults>
</compile_context>

<pallas_src>
import jax
import jax.numpy as jnp
from jax.experimental import pallas as pl
from jax.experimental.pallas import tpu as pltpu


def _round_up(x, m):
    return ((x + m - 1) // m) * m


def _glu_kernel(x_ref, wt_ref, o_ref):
    # x_ref: (tm, Fp) tile of input rows; wt_ref: (Fp, Fp) pre-transposed gate weight.
    x = x_ref[...]
    # gate(x) = x @ W^T; W^T was materialized once in the wrapper, so this is a
    # plain full-width MXU matmul with f32 accumulation.
    g = jnp.dot(x, wt_ref[...], preferred_element_type=jnp.float32)
    o_ref[...] = (x.astype(jnp.float32) * jax.nn.sigmoid(g)).astype(o_ref.dtype)


def glu_forward(x, w_eff, *, tm=256):
    """GLU forward: x * sigmoid(x @ w_eff.T).

    x: (..., F) float array; w_eff: (F, F) effective (weight-normed) gate weight.
    """
    orig_shape = x.shape
    F = orig_shape[-1]
    x2d = x.reshape(-1, F)
    M = x2d.shape[0]

    # Lane-pad the feature dim to a multiple of 128 (dense stores, full-width MXU).
    Fp = _round_up(max(F, 128), 128)
    # Sublane granularity: 8 for f32, 16 for bf16.
    sub = 16 if x.dtype == jnp.bfloat16 else 8
    # Big row tile to amortize per-step overhead, but don't overshoot tiny inputs.
    tm_eff = max(sub, min(_round_up(tm, sub), _round_up(M, sub)))
    Mp = _round_up(M, tm_eff)

    # Zero-pad rows and features. Padded feature columns of x are zero and padded
    # rows/cols of the weight are zero, so the [:M, :F] output slab is exact.
    if (Mp, Fp) != (M, F):
        x_p = jnp.pad(x2d, ((0, Mp - M), (0, Fp - F)))
    else:
        x_p = x2d
    wt = jnp.pad(w_eff.T.astype(x.dtype), ((0, Fp - F), (0, Fp - F)))

    dtype_bytes = jnp.dtype(x.dtype).itemsize
    # double-buffered x tile + double-buffered out tile + double-buffered weight
    est = 2 * (2 * tm_eff * Fp) * dtype_bytes + 2 * Fp * Fp * dtype_bytes
    vmem_bytes = int(min(max(est * 5 // 4 + (1 << 20), 32 * 1024 * 1024),
                         56 * 1024 * 1024))

    out = pl.pallas_call(
        _glu_kernel,
        out_shape=jax.ShapeDtypeStruct((Mp, Fp), x.dtype),
        grid_spec=pltpu.PrefetchScalarGridSpec(
            num_scalar_prefetch=0,
            grid=(Mp // tm_eff,),
            in_specs=[
                pl.BlockSpec((tm_eff, Fp), lambda i: (i, 0)),  # row tile of x
                pl.BlockSpec((Fp, Fp), lambda i: (0, 0)),      # resident gate weight
            ],
            out_specs=pl.BlockSpec((tm_eff, Fp), lambda i: (i, 0)),
        ),
        compiler_params=pltpu.CompilerParams(
            dimension_semantics=("parallel",),
            vmem_limit_bytes=vmem_bytes,
        ),
    )(x_p, wt)

    return out[:M, :F].reshape(orig_shape)


def make_glu_params(feat_size, key):
    """Deterministic synthetic init of the weight-normed gate Linear(F, F, bias=False)."""
    kv, kg = jax.random.split(key)
    v = jax.random.normal(kv, (feat_size, feat_size), dtype=jnp.float32)
    g = jax.random.uniform(kg, (feat_size, 1), dtype=jnp.float32, minval=0.5, maxval=1.5)
    # weight_norm: W_eff = g * v / ||v||  (norm over input dim, per output row)
    w_eff = g * v / jnp.linalg.norm(v, axis=1, keepdims=True)
    return w_eff


if __name__ == "__main__":
    key = jax.random.PRNGKey(0)
    kx, kw = jax.random.split(key)

    batch, seq, feat = 2, 8, 32
    x = jax.random.normal(kx, (batch, seq, feat), dtype=jnp.float32)
    w_eff = make_glu_params(feat, kw)

    out = glu_forward(x, w_eff)
    out = jax.block_until_ready(out)

    # Reference check in plain JAX (nn.Linear convention: gate(x) = x @ W^T).
    ref = x * jax.nn.sigmoid(jnp.einsum("bsf,gf->bsg", x, w_eff))
    assert out.shape == x.shape
    assert jnp.allclose(out, ref, atol=1e-5, rtol=1e-5), "mismatch vs reference"

    print("KERNEL_OK")
</pallas_src>

<mosaic_0001>
module attributes {stable_mosaic.version = 11 : i64} {
  func.func @_glu_kernel(%arg0: i32, %arg1: memref<16x128xf32, #tpu.memory_space<vmem>>, %arg2: memref<128x128xf32, #tpu.memory_space<vmem>>, %arg3: memref<16x128xf32, #tpu.memory_space<vmem>>) attributes {dimension_semantics = [#tpu.dimension_semantics<parallel>], iteration_bounds = array<i64: 1>, scalar_prefetch = 0 : i64, scratch_operands = 0 : i64, tpu.core_type = #tpu.core_type<tc>, window_params = [{transform_indices = @transform_0, window_bounds = array<i64: 16, 128>}, {pipeline_mode = #tpu.pipeline_mode<synchronous>, transform_indices = @transform_1, window_bounds = array<i64: 128, 128>}, {transform_indices = @transform_2, window_bounds = array<i64: 16, 128>}]} {
    %c0 = arith.constant 0 : index
    %c0_0 = arith.constant 0 : index
    %0 = vector.load %arg1[%c0, %c0_0] : memref<16x128xf32, #tpu.memory_space<vmem>>, vector<16x128xf32>
    %c0_1 = arith.constant 0 : index
    %c0_2 = arith.constant 0 : index
    %1 = vector.load %arg2[%c0_1, %c0_2] : memref<128x128xf32, #tpu.memory_space<vmem>>, vector<128x128xf32>
    %cst = arith.constant dense<0.000000e+00> : vector<16x128xf32>
    %2 = tpu.matmul %0, %1, %cst {dimension_numbers = #tpu.dot_dimension_numbers<[1], [0], [0], [1], [0, 0, 1, 1], [], []>} : vector<16x128xf32>, vector<128x128xf32>, vector<16x128xf32> -> vector<16x128xf32>
    %3 = arith.negf %2 : vector<16x128xf32>
    %4 = math.exp %3 : vector<16x128xf32>
    %cst_3 = arith.constant 1.000000e+00 : f32
    %5 = vector.broadcast %cst_3 : f32 to vector<16x128xf32>
    %6 = arith.addf %5, %4 : vector<16x128xf32>
    %7 = arith.divf %5, %6 : vector<16x128xf32>
    %8 = arith.mulf %0, %7 : vector<16x128xf32>
    %c0_4 = arith.constant 0 : index
    %c0_5 = arith.constant 0 : index
    %9 = vector.load %arg3[%c0_4, %c0_5] : memref<16x128xf32, #tpu.memory_space<vmem>>, vector<16x128xf32>
    tpu.vector_store %arg3[%c0_4, %c0_5], %8 {strides = array<i32>} : memref<16x128xf32, #tpu.memory_space<vmem>>, vector<16x128xf32>,
    return
  }
  func.func @transform_0(%arg0: i32) -> (i32, i32) {
    %c0_i32 = arith.constant 0 : i32
    %c0_i32_0 = arith.constant 0 : i32
    return %arg0, %c0_i32 : i32, i32
  }
  func.func @transform_1(%arg0: i32) -> (i32, i32) {
    %c0_i32 = arith.constant 0 : i32
    %c0_i32_0 = arith.constant 0 : i32
    %c0_i32_1 = arith.constant 0 : i32
    return %c0_i32, %c0_i32_0 : i32, i32
  }
  func.func @transform_2(%arg0: i32) -> (i32, i32) {
    %c0_i32 = arith.constant 0 : i32
    %c0_i32_0 = arith.constant 0 : i32
    return %arg0, %c0_i32 : i32, i32
  }
}

</mosaic_0001>

<llo_original>
// kernel: tpu_custom_call.1
$region0: #{tpu_custom_call.1}
  #allocation0 [shape = 'u32[]', space=smem, size = 0x4, offset = 0x4, fixed_abs, tag = 'smem constant byte address 0x4 - core index']
  #allocation1 [shape = 'u32[144,128]{1,0:T(1,128)}', space=vmem, size = 0x12000, scoped, tag = 'internal scratch']
  %s0 = inlined_call_operand.hbm [shape: f32[16,128], index: 0, kind: input, shape index: {}]
  %s1 = inlined_call_operand.hbm [shape: f32[128,128], index: 1, kind: input, shape index: {}]
  %s2 = inlined_call_operand.hbm [shape: f32[16,128], index: 2, kind: output, shape index: {}]
  %s3 = sld [smem:[#allocation0]]
  $region26: #{tpu_custom_call.1} parent=0
    _
  %s5 = ssub.s32 1, %s3
  %s6 = scalar_select 0, %s5, %s3
  $region1: #{tpu_custom_call.1} parent=0
    #allocation2 [shape = 'u8[8192]{0}', space=vmem, size = 0x2000, scoped, tag = 'input window, operand 0, single buffered']
    #allocation3 [shape = 's32[1]{0}', space=sflag, size = 0x4, scoped, tag = 'scoped memory for tpu_custom_call.1']
    #allocation4 [shape = 's32[1]{0}', space=sflag, size = 0x4, scoped, tag = 'scoped memory for tpu_custom_call.1']
    #allocation5 [shape = 'u8[65536]{0}', space=vmem, size = 0x10000, scoped, tag = 'input window, operand 1, single buffered']
    #allocation6 [shape = 's32[1]{0}', space=sflag, size = 0x4, scoped, tag = 'scoped memory for tpu_custom_call.1']
    #allocation7 [shape = 'u8[8192]{0}', space=vmem, size = 0x2000, scoped, tag = 'output window, operand 0, single buffered']
    %7 = vsyncpa [#allocation3], 0
    %8 = vsyncpa [#allocation6], 0
    %9 = vsyncpa [#allocation4], 0
    // Predicated region
    $region2: #{tpu_custom_call.1} parent=1 // pred_check
      _
    $region3: #{tpu_custom_call.1} parent=1 // pred_check_branch
      %11 = sbr.rel (0) target = $region5
    $region4: #{tpu_custom_call.1} parent=1 // pred_region
      %s13 = ssub.s32 256, 256
      %14 = vsyncadd [#allocation3], %s13
      %s15 = sshll.u32 [#allocation2], 4
      %s16 = int_to_ptr.vmem [resolvable:$true] %s15
      %21 = dma.hbm_to_vmem [thread:$0]  %s0, 256, %s16, [#allocation3], 128, 128, 8
    $region5: #{tpu_custom_call.1} parent=1 // pred_fallthru
      _
    // Predicated region
    $region6: #{tpu_custom_call.1} parent=1 // pred_check
      _
    $region7: #{tpu_custom_call.1} parent=1 // pred_check_branch
      %23 = sbr.rel (0) target = $region9
    $region8: #{tpu_custom_call.1} parent=1 // pred_region
      %s25 = ssub.s32 2048, 2048
      %26 = vsyncadd [#allocation6], %s25
      %s27 = sshll.u32 [#allocation5], 4
      %s28 = int_to_ptr.vmem [resolvable:$true] %s27
      %33 = dma.hbm_to_vmem [thread:$0]  %s1, 2048, %s28, [#allocation6], 128, 128, 8
    $region9: #{tpu_custom_call.1} parent=1 // pred_fallthru
      _
    // Predicated region
    $region10: #{tpu_custom_call.1} parent=1 // pred_check
      _
    $region11: #{tpu_custom_call.1} parent=1 // pred_check_branch
      %35 = sbr.rel (0) target = $region13
    $region12: #{tpu_custom_call.1} parent=1 // pred_region
      %36 = dma.done [#allocation3], 256
    $region13: #{tpu_custom_call.1} parent=1 // pred_fallthru
      _
    // Predicated region
    $region14: #{tpu_custom_call.1} parent=1 // pred_check
      _
    $region15: #{tpu_custom_call.1} parent=1 // pred_check_branch
      %38 = sbr.rel (0) target = $region17
    $region16: #{tpu_custom_call.1} parent=1 // pred_region
      %39 = dma.done [#allocation6], 2048
    $region17: #{tpu_custom_call.1} parent=1 // pred_fallthru
      _
    %v40 = vld [vmem:[#allocation2] sm:$0xff]
    %v41 = vld [vmem:[#allocation2 + $0x8] sm:$0xff]
    %v42 = vld [vmem:[#allocation5] sm:$0xff]
    %v43 = vld [vmem:[#allocation5 + $0x8] sm:$0xff]
    %v44 = vld [vmem:[#allocation5 + $0x10] sm:$0xff]
    %v45 = vld [vmem:[#allocation5 + $0x18] sm:$0xff]
    %v46 = vld [vmem:[#allocation5 + $0x20] sm:$0xff]
    %v47 = vld [vmem:[#allocation5 + $0x28] sm:$0xff]
    %v48 = vld [vmem:[#allocation5 + $0x30] sm:$0xff]
    %v49 = vld [vmem:[#allocation5 + $0x38] sm:$0xff]
    %v50 = vld [vmem:[#allocation5 + $0x40] sm:$0xff]
    %v51 = vld [vmem:[#allocation5 + $0x48] sm:$0xff]
    %v52 = vld [vmem:[#allocation5 + $0x50] sm:$0xff]
    %v53 = vld [vmem:[#allocation5 + $0x58] sm:$0xff]
    %v54 = vld [vmem:[#allocation5 + $0x60] sm:$0xff]
    %v55 = vld [vmem:[#allocation5 + $0x68] sm:$0xff]
    %v56 = vld [vmem:[#allocation5 + $0x70] sm:$0xff]
    %v57 = vld [vmem:[#allocation5 + $0x78] sm:$0xff]
    %58 = vmatprep.subr.mxu0 0.0
    %59 = vmatpush1.msra.mxu0 %v42
    %60 = vmatprep.subr.mxu0 0.0
    %61 = vmatpush1.msra.mxu0 %v43
    %62 = vmatprep.subr.mxu0 0.0
    %63 = vmatpush1.msra.mxu0 %v44
    %64 = vmatprep.subr.mxu0 0.0
    %65 = vmatpush1.msra.mxu0 %v45
    %66 = vmatprep.subr.mxu0 0.0
    %67 = vmatpush1.msra.mxu0 %v46
    %68 = vmatprep.subr.mxu0 0.0
    %69 = vmatpush1.msra.mxu0 %v47
    %70 = vmatprep.subr.mxu0 0.0
    %71 = vmatpush1.msra.mxu0 %v48
    %72 = vmatprep.subr.mxu0 0.0
    %73 = vmatpush1.msra.mxu0 %v49
    %74 = vmatprep.subr.mxu0 0.0
    %75 = vmatpush1.msra.mxu0 %v50
    %76 = vmatprep.subr.mxu0 0.0
    %77 = vmatpush1.msra.mxu0 %v51
    %78 = vmatprep.subr.mxu0 0.0
    %79 = vmatpush1.msra.mxu0 %v52
    %80 = vmatprep.subr.mxu0 0.0
    %81 = vmatpush1.msra.mxu0 %v53
    %82 = vmatprep.subr.mxu0 0.0
    %83 = vmatpush1.msra.mxu0 %v54
    %84 = vmatprep.subr.mxu0 0.0
    %85 = vmatpush1.msra.mxu0 %v55
    %86 = vmatprep.subr.mxu0 0.0
    %87 = vmatpush1.msra.mxu0 %v56
    %88 = vmatprep.subr.mxu0 0.0
    %89 = vmatpush1.msra.mxu0 %v57
    %90 = vmatprep.subr.mxu0 0.0
    %91 = vmatpush1.msra.mxu0 0.0
    %92 = vmatprep.subr.mxu0 0.0
    %93 = vmatpush1.msra.mxu0 0.0
    %94 = vmatprep.subr.mxu0 0.0
    %95 = vmatpush1.msra.mxu0 0.0
    %96 = vmatprep.subr.mxu0 0.0
    %97 = vmatpush1.msra.mxu0 0.0
    %98 = vmatprep.subr.mxu0 0.0
    %99 = vmatpush1.msra.mxu0 0.0
    %100 = vmatprep.subr.mxu0 0.0
    %101 = vmatpush1.msra.mxu0 0.0
    %102 = vmatprep.subr.mxu0 0.0
    %103 = vmatpush1.msra.mxu0 0.0
    %104 = vmatprep.subr.mxu0 0.0
    %105 = vmatpush1.msra.mxu0 0.0
    %106 = vmatprep.subr.mxu0 0.0
    %107 = vmatpush1.msra.mxu0 0.0
    %108 = vmatprep.subr.mxu0 0.0
    %109 = vmatpush1.msra.mxu0 0.0
    %110 = vmatprep.subr.mxu0 0.0
    %111 = vmatpush1.msra.mxu0 0.0
    %112 = vmatprep.subr.mxu0 0.0
    %113 = vmatpush1.msra.mxu0 0.0
    %114 = vmatprep.subr.mxu0 0.0
    %115 = vmatpush1.msra.mxu0 0.0
    %116 = vmatprep.subr.mxu0 0.0
    %117 = vmatpush1.msra.mxu0 0.0
    %118 = vmatprep.subr.mxu0 0.0
    %119 = vmatpush1.msra.mxu0 0.0
    %120 = vmatprep.subr.mxu0 0.0
    %121 = vmatpush1.msra.mxu0 0.0
    %122 = vmatprep.mubr.f32.mxu0 0.0
    %123 = vmatmul.mubr.f32.gmra.mrb[0].mxu0 %v40
    %v124 = vpop.f32.mrb[0].mxu0
    %v125 = vadd.f32 0.0, %v124
    %v126 = vpop.f32.mrb[0].mxu0
    %127 = vmatprep.mubr.f32.mxu0 0.0
    %128 = vmatmul.mubr.f32.gmra.mrb[0].mxu0 %v41
    %v129 = vpop.f32.mrb[0].mxu0
    %v130 = vadd.f32 0.0, %v129
    %v131 = vpop.f32.mrb[0].mxu0
    %132 = vdwg.mxu0
    %v133 = vxor.u32 %v125, 2147483648
    %v134 = vxor.u32 %v130, 2147483648
    %v135 = vmul.f32 %v133, 1.442695
    %v136 = vpow.pop %v135
    %v137 = vmul.f32 %v134, 1.442695
    %v138 = vpow.pop %v137
    %v139 = vadd.f32 %v136, 1.0
    %v140 = vadd.f32 %v138, 1.0
    %v141 = vrcp.pop %v139
    %v142 = vmul.f32 1.0, %v141
    %v143 = vrcp.pop %v140
    %v144 = vmul.f32 1.0, %v143
    %v145 = vmul.f32 %v40, %v142
    %v146 = vmul.f32 %v41, %v144
    %147 = vst [vmem:[#allocation7] sm:$0xff] %v145
    %148 = vst [vmem:[#allocation7 + $0x8] sm:$0xff] %v146
    // Predicated region
    $region18: #{tpu_custom_call.1} parent=1 // pred_check
      _
    $region19: #{tpu_custom_call.1} parent=1 // pred_check_branch
      %150 = sbr.rel (0) target = $region21
    $region20: #{tpu_custom_call.1} parent=1 // pred_region
      %s152 = ssub.s32 256, 256
      %153 = vsyncadd [#allocation4], %s152
      %s154 = sshll.u32 [#allocation7], 4
      %s155 = int_to_ptr.vmem [resolvable:$true] %s154
      %160 = dma.vmem_to_hbm [thread:$0]  %s155, 256, %s2, [#allocation4], 128, 128, 8
    $region21: #{tpu_custom_call.1} parent=1 // pred_fallthru
      _
    // Predicated region
    $region22: #{tpu_custom_call.1} parent=1 // pred_check
      _
    $region23: #{tpu_custom_call.1} parent=1 // pred_check_branch
      %162 = sbr.rel (0) target = $region25
    $region24: #{tpu_custom_call.1} parent=1 // pred_region
      %163 = dma.done [#allocation4], 256
    $region25: #{tpu_custom_call.1} parent=1 // pred_fallthru
      _
    %164 = vsyncpa [#allocation3], 1
    %165 = vsyncpa [#allocation6], 1
    %166 = vsyncpa [#allocation4], 1

</llo_original>
